<compile_context>
chip_gen: v7x
topology: tpu7x:2x2x1
jax: 0.10.0
libtpu: 0.0.40
codegen_flags: <defaults>
</compile_context>

<pallas_src>
import numpy as np
import jax
import jax.numpy as jnp
from jax.experimental import pallas as pl
from jax.experimental.pallas import tpu as pltpu


def neural_ode_kernel(dt_ref, x0_ref, cur_ref,
                      w1x_ref, w1c_ref, tb1_ref, w2_ref, b2_ref,
                      out_ref):
    """One batch tile of the full Euler integration (batch on lanes).

    dt_ref  : (N-1,)     SMEM  time deltas (scalar-prefetched)
    x0_ref  : (S, BB)    VMEM  initial state tile, batch lane-dense
    cur_ref : (N-1, BB)  VMEM  pre-gathered current_profile per step, lane-dense
    w1x_ref : (H, S)     VMEM  first-layer rows acting on x (transposed)
    w1c_ref : (H, 1)     VMEM  first-layer row acting on the current input
    tb1_ref : (H, N-1)   VMEM  precomputed t_k * W1_time + b1 per step
    w2_ref  : (H, S)     VMEM  second-layer weight
    b2_ref  : (S, 1)     VMEM
    out_ref : (N*S, BB)  VMEM  lane-dense trajectory (step-major rows)
    """
    H, S = w1x_ref.shape
    Nm1 = cur_ref.shape[0]

    # Small weight loads, hoisted out of the integration loop.
    w1x = w1x_ref[...]          # (H, S)
    w1c = w1c_ref[...]          # (H, 1)
    tb1 = tb1_ref[...]          # (H, N-1)
    w2 = w2_ref[...]            # (H, S)
    b2 = b2_ref[...]            # (S, 1)

    x = x0_ref[...]             # (S, BB)
    out_ref[0:S, :] = x         # trajectory row 0 is x0

    # Statically unrolled Euler integration (N is small and fixed).
    # TODO(synk): switch to lax.fori_loop with per-step dynamic stores if N grows > ~16.
    for k in range(Nm1):
        # First layer: h_pre[h,b] = sum_s W1[s,h]*x[s,b] + cur_k[b]*W1[S,h]
        #                           + (t_k*W1[S+1,h] + b1[h])
        cur_k = cur_ref[k:k + 1, :]                          # (1, BB)
        h_pre = cur_k * w1c + tb1[:, k:k + 1]                # (H, BB), VPU
        # Unrolled outer-product MAC over the tiny S contraction (no MXU).
        for s in range(S):
            h_pre = h_pre + w1x[:, s:s + 1] * x[s:s + 1, :]
        h = jnp.tanh(h_pre)                                  # (H, BB), EUP

        # Second layer: f[s,b] = sum_h W2[h,s]*h[h,b] + b2[s]  (sublane reduce)
        f_rows = [jnp.sum(w2[:, s:s + 1] * h, axis=0, keepdims=True)
                  for s in range(S)]
        f = (f_rows[0] if S == 1 else jnp.concatenate(f_rows, axis=0)) + b2

        x = x + dt_ref[k] * f                                # Euler step
        out_ref[(k + 1) * S:(k + 2) * S, :] = x              # per-step store


def neural_ode_forward(x0, current_profile, t, params, *, batch_block=256):
    """x0: (B, S), current_profile: (B, T, 1), t: (N,) -> (B, N, S)."""
    w1, b1, w2, b2 = params
    x0 = x0.astype(jnp.float32)
    t = t.astype(jnp.float32)
    B, S = x0.shape
    T = current_profile.shape[1]
    N = t.shape[0]
    H = w1.shape[1]

    prof = current_profile.reshape(B, T).astype(jnp.float32)

    # Hoisted profile gather: idx_k = int(t_k * (T-1)), truncation toward zero.
    # PyTorch would raise on an out-of-range index; we clamp instead.
    idx = jnp.clip((t[:-1] * jnp.float32(T - 1)).astype(jnp.int32), 0, T - 1)
    cur = jnp.take(prof, idx, axis=1)                         # (B, N-1)
    dt = t[1:] - t[:-1]                                       # (N-1,)

    # Weight prep (transposed so H sits on sublanes, batch on lanes).
    w1 = w1.astype(jnp.float32)
    w1x_t = w1[:S, :].T                                       # (H, S)
    w1c_t = w1[S:S + 1, :].T                                  # (H, 1)
    w1t_col = w1[S + 1:S + 2, :].T                            # (H, 1)
    b1_col = jnp.reshape(b1.astype(jnp.float32), (H, 1))
    # Batch-independent first-layer term, hoisted to XLA: (H, N-1).
    tb1 = w1t_col * t[:-1][None, :] + b1_col
    w2 = w2.astype(jnp.float32)                               # (H, S)
    b2_col = jnp.reshape(b2.astype(jnp.float32), (S, 1))

    # Batch lives on the lane axis: tiles are multiples of 128 lanes.
    BB = max(128, min(int(batch_block), pl.cdiv(B, 128) * 128))
    BB = pl.cdiv(BB, 128) * 128
    Bp = pl.cdiv(B, BB) * BB
    padB = Bp - B

    x0_t = jnp.pad(x0.T, ((0, 0), (0, padB)))                 # (S, Bp)
    cur_t = jnp.pad(cur.T, ((0, 0), (0, padB)))               # (N-1, Bp)

    # index_maps receive the scalar-prefetch ref (dt) as a trailing arg.
    wmap = lambda i, dt_s: (0, 0)      # weights: same block for every tile
    bmap = lambda i, dt_s: (0, i)      # batch-tiled (lane axis) arrays

    out = pl.pallas_call(
        neural_ode_kernel,
        out_shape=jax.ShapeDtypeStruct((N * S, Bp), jnp.float32),
        grid_spec=pltpu.PrefetchScalarGridSpec(
            num_scalar_prefetch=1,                     # dt -> SMEM
            grid=(Bp // BB,),
            in_specs=[
                pl.BlockSpec((S, BB), bmap),           # x0 (transposed)
                pl.BlockSpec((N - 1, BB), bmap),       # cur (pre-gathered, transposed)
                pl.BlockSpec((H, S), wmap),            # w1x^T
                pl.BlockSpec((H, 1), wmap),            # w1c
                pl.BlockSpec((H, N - 1), wmap),        # t_k*w1t + b1
                pl.BlockSpec((H, S), wmap),            # w2
                pl.BlockSpec((S, 1), wmap),            # b2
            ],
            out_specs=pl.BlockSpec((N * S, BB), bmap),
        ),
        compiler_params=pltpu.CompilerParams(
            dimension_semantics=("parallel",),         # batch tiles -> 2 TCs on v7x
        ),
    )(dt, x0_t, cur_t, w1x_t, w1c_t, tb1, w2, b2_col)

    # (N*S, Bp) -> (B, N, S)
    return out[:, :B].T.reshape(B, N, S)


def init_params(key, state_dim, hidden_dim):
    """Xavier-uniform weights, zero biases (matches ODEFunc._initialize_weights)."""
    k1, k2 = jax.random.split(key)
    in1, out1 = state_dim + 2, hidden_dim
    bound1 = np.sqrt(6.0 / (in1 + out1))
    w1 = jax.random.uniform(k1, (in1, out1), jnp.float32, -bound1, bound1)
    in2, out2 = hidden_dim, state_dim
    bound2 = np.sqrt(6.0 / (in2 + out2))
    w2 = jax.random.uniform(k2, (in2, out2), jnp.float32, -bound2, bound2)
    b1 = jnp.zeros((hidden_dim,), jnp.float32)
    b2 = jnp.zeros((state_dim,), jnp.float32)
    return (w1, b1, w2, b2)


def reference_forward(x0, current_profile, t, params):
    """Pure numpy reference of the PyTorch forward (euler odeint + permute)."""
    w1, b1, w2, b2 = [np.asarray(p, dtype=np.float32) for p in params]
    x0 = np.asarray(x0, dtype=np.float32)
    prof = np.asarray(current_profile, dtype=np.float32)
    t = np.asarray(t, dtype=np.float32)
    B, S = x0.shape
    T = prof.shape[1]
    N = t.shape[0]
    xs = [x0]
    x = x0
    for k in range(N - 1):
        tk = np.float32(t[k])
        dt = np.float32(t[k + 1] - t[k])
        idx = int(np.float32(tk * np.float32(T - 1)))   # trunc toward zero
        cur = prof[:, idx, :]                            # (B, 1)
        tcol = np.full((B, 1), tk, dtype=np.float32)
        inp = np.concatenate([x, cur, tcol], axis=-1)    # (B, S+2)
        h = np.tanh(inp @ w1 + b1)
        f = h @ w2 + b2
        x = x + dt * f
        xs.append(x)
    out = np.stack(xs, axis=0)           # (N, B, S)
    return np.transpose(out, (1, 0, 2))  # (B, N, S)


if __name__ == "__main__":
    B, S, H = 2, 1, 32     # batch, state_dim, hidden_dim
    T, N = 64, 8           # profile length, number of time steps

    key = jax.random.PRNGKey(0)
    kp, kx, kc = jax.random.split(key, 3)

    params = init_params(kp, S, H)

    # normalized initial voltage in [0, 1] (cf. normalize(27.1, vmin, vmax))
    x0 = jax.random.uniform(kx, (B, S), jnp.float32, 0.2, 0.9)
    # current profile: power / nominal_voltage, positive values
    current_profile = jax.random.uniform(kc, (B, T, 1), jnp.float32, 0.5, 2.0)
    # time grid with exact binary-fraction values (avoids index boundary noise)
    t = jnp.arange(N, dtype=jnp.float32) / np.float32(N)

    out = neural_ode_forward(x0, current_profile, t, params)
    out = jax.block_until_ready(out)

    ref = reference_forward(x0, current_profile, t, params)
    np.testing.assert_allclose(np.asarray(out), ref, rtol=1e-5, atol=1e-5)

    print("KERNEL_OK")
</pallas_src>

<mosaic_0001>
module attributes {stable_mosaic.version = 11 : i64} {
  func.func @neural_ode_kernel(%arg0: i32, %arg1: memref<7xf32, #tpu.memory_space<smem>>, %arg2: memref<1x128xf32, #tpu.memory_space<vmem>>, %arg3: memref<7x128xf32, #tpu.memory_space<vmem>>, %arg4: memref<32x1xf32, #tpu.memory_space<vmem>>, %arg5: memref<32x1xf32, #tpu.memory_space<vmem>>, %arg6: memref<32x7xf32, #tpu.memory_space<vmem>>, %arg7: memref<32x1xf32, #tpu.memory_space<vmem>>, %arg8: memref<1x1xf32, #tpu.memory_space<vmem>>, %arg9: memref<8x128xf32, #tpu.memory_space<vmem>>) attributes {dimension_semantics = [#tpu.dimension_semantics<parallel>], iteration_bounds = array<i64: 1>, scalar_prefetch = 1 : i64, scratch_operands = 0 : i64, tpu.core_type = #tpu.core_type<tc>, window_params = [{transform_indices = @transform_0, window_bounds = array<i64: 1, 128>}, {transform_indices = @transform_1, window_bounds = array<i64: 7, 128>}, {pipeline_mode = #tpu.pipeline_mode<synchronous>, transform_indices = @transform_2, window_bounds = array<i64: 32, 1>}, {pipeline_mode = #tpu.pipeline_mode<synchronous>, transform_indices = @transform_3, window_bounds = array<i64: 32, 1>}, {pipeline_mode = #tpu.pipeline_mode<synchronous>, transform_indices = @transform_4, window_bounds = array<i64: 32, 7>}, {pipeline_mode = #tpu.pipeline_mode<synchronous>, transform_indices = @transform_5, window_bounds = array<i64: 32, 1>}, {pipeline_mode = #tpu.pipeline_mode<synchronous>, transform_indices = @transform_6, window_bounds = array<i64: 1, 1>}, {transform_indices = @transform_7, window_bounds = array<i64: 8, 128>}]} {
    %c0 = arith.constant 0 : index
    %c0_0 = arith.constant 0 : index
    %0 = vector.load %arg4[%c0, %c0_0] : memref<32x1xf32, #tpu.memory_space<vmem>>, vector<32x1xf32>
    %c0_1 = arith.constant 0 : index
    %c0_2 = arith.constant 0 : index
    %1 = vector.load %arg5[%c0_1, %c0_2] : memref<32x1xf32, #tpu.memory_space<vmem>>, vector<32x1xf32>
    %c0_3 = arith.constant 0 : index
    %c0_4 = arith.constant 0 : index
    %2 = vector.load %arg6[%c0_3, %c0_4] : memref<32x7xf32, #tpu.memory_space<vmem>>, vector<32x7xf32>
    %c0_5 = arith.constant 0 : index
    %c0_6 = arith.constant 0 : index
    %3 = vector.load %arg7[%c0_5, %c0_6] : memref<32x1xf32, #tpu.memory_space<vmem>>, vector<32x1xf32>
    %c0_7 = arith.constant 0 : index
    %c0_8 = arith.constant 0 : index
    %4 = vector.load %arg8[%c0_7, %c0_8] : memref<1x1xf32, #tpu.memory_space<vmem>>, vector<1x1xf32>
    %c0_9 = arith.constant 0 : index
    %c0_10 = arith.constant 0 : index
    %5 = vector.load %arg2[%c0_9, %c0_10] : memref<1x128xf32, #tpu.memory_space<vmem>>, vector<1x128xf32>
    %c0_11 = arith.constant 0 : index
    %c0_12 = arith.constant 0 : index
    %6 = vector.load %arg9[%c0_11, %c0_12] : memref<8x128xf32, #tpu.memory_space<vmem>>, vector<1x128xf32>
    tpu.vector_store %arg9[%c0_11, %c0_12], %5 {strides = array<i32>} : memref<8x128xf32, #tpu.memory_space<vmem>>, vector<1x128xf32>,
    %c0_13 = arith.constant 0 : index
    %c0_14 = arith.constant 0 : index
    %7 = vector.load %arg3[%c0_13, %c0_14] : memref<7x128xf32, #tpu.memory_space<vmem>>, vector<1x128xf32>
    %8 = vector.broadcast %7 : vector<1x128xf32> to vector<32x128xf32>
    %9 = vector.broadcast %1 : vector<32x1xf32> to vector<32x128xf32>
    %10 = arith.mulf %8, %9 : vector<32x128xf32>
    %11 = vector.extract_strided_slice %2 {offsets = [0, 0], sizes = [32, 1], strides = [1, 1]} : vector<32x7xf32> to vector<32x1xf32>
    %12 = vector.broadcast %11 : vector<32x1xf32> to vector<32x128xf32>
    %13 = arith.addf %10, %12 : vector<32x128xf32>
    %14 = vector.broadcast %0 : vector<32x1xf32> to vector<32x128xf32>
    %15 = vector.broadcast %5 : vector<1x128xf32> to vector<32x128xf32>
    %16 = arith.mulf %14, %15 : vector<32x128xf32>
    %17 = arith.addf %13, %16 : vector<32x128xf32>
    %18 = math.tanh %17 : vector<32x128xf32>
    %19 = vector.broadcast %3 : vector<32x1xf32> to vector<32x128xf32>
    %20 = arith.mulf %19, %18 : vector<32x128xf32>
    %cst = arith.constant dense<0.000000e+00> : vector<128xf32>
    %21 = vector.multi_reduction <add>, %20, %cst [0] : vector<32x128xf32> to vector<128xf32>
    %22 = vector.shape_cast %21 : vector<128xf32> to vector<1x128xf32>
    %23 = vector.broadcast %4 : vector<1x1xf32> to vector<1x128xf32>
    %24 = arith.addf %22, %23 : vector<1x128xf32>
    %c0_15 = arith.constant 0 : index
    %25 = memref.load %arg1[%c0_15] : memref<7xf32, #tpu.memory_space<smem>>
    %26 = vector.broadcast %25 : f32 to vector<1x128xf32>
    %27 = arith.mulf %26, %24 : vector<1x128xf32>
    %28 = arith.addf %5, %27 : vector<1x128xf32>
    %c1 = arith.constant 1 : index
    %c0_16 = arith.constant 0 : index
    %29 = vector.load %arg9[%c1, %c0_16] : memref<8x128xf32, #tpu.memory_space<vmem>>, vector<1x128xf32>
    tpu.vector_store %arg9[%c1, %c0_16], %28 {strides = array<i32>} : memref<8x128xf32, #tpu.memory_space<vmem>>, vector<1x128xf32>,
    %c1_17 = arith.constant 1 : index
    %c0_18 = arith.constant 0 : index
    %30 = vector.load %arg3[%c1_17, %c0_18] : memref<7x128xf32, #tpu.memory_space<vmem>>, vector<1x128xf32>
    %31 = vector.broadcast %30 : vector<1x128xf32> to vector<32x128xf32>
    %32 = vector.broadcast %1 : vector<32x1xf32> to vector<32x128xf32>
    %33 = arith.mulf %31, %32 : vector<32x128xf32>
    %34 = vector.extract_strided_slice %2 {offsets = [0, 1], sizes = [32, 1], strides = [1, 1]} : vector<32x7xf32> to vector<32x1xf32>
    %35 = vector.broadcast %34 : vector<32x1xf32> to vector<32x128xf32>
    %36 = arith.addf %33, %35 : vector<32x128xf32>
    %37 = vector.broadcast %0 : vector<32x1xf32> to vector<32x128xf32>
    %38 = vector.broadcast %28 : vector<1x128xf32> to vector<32x128xf32>
    %39 = arith.mulf %37, %38 : vector<32x128xf32>
    %40 = arith.addf %36, %39 : vector<32x128xf32>
    %41 = math.tanh %40 : vector<32x128xf32>
    %42 = vector.broadcast %3 : vector<32x1xf32> to vector<32x128xf32>
    %43 = arith.mulf %42, %41 : vector<32x128xf32>
    %cst_19 = arith.constant dense<0.000000e+00> : vector<128xf32>
    %44 = vector.multi_reduction <add>, %43, %cst_19 [0] : vector<32x128xf32> to vector<128xf32>
    %45 = vector.shape_cast %44 : vector<128xf32> to vector<1x128xf32>
    %46 = vector.broadcast %4 : vector<1x1xf32> to vector<1x128xf32>
    %47 = arith.addf %45, %46 : vector<1x128xf32>
    %c1_20 = arith.constant 1 : index
    %48 = memref.load %arg1[%c1_20] : memref<7xf32, #tpu.memory_space<smem>>
    %49 = vector.broadcast %48 : f32 to vector<1x128xf32>
    %50 = arith.mulf %49, %47 : vector<1x128xf32>
    %51 = arith.addf %28, %50 : vector<1x128xf32>
    %c2 = arith.constant 2 : index
    %c0_21 = arith.constant 0 : index
    %52 = vector.load %arg9[%c2, %c0_21] : memref<8x128xf32, #tpu.memory_space<vmem>>, vector<1x128xf32>
    tpu.vector_store %arg9[%c2, %c0_21], %51 {strides = array<i32>} : memref<8x128xf32, #tpu.memory_space<vmem>>, vector<1x128xf32>,
    %c2_22 = arith.constant 2 : index
    %c0_23 = arith.constant 0 : index
    %53 = vector.load %arg3[%c2_22, %c0_23] : memref<7x128xf32, #tpu.memory_space<vmem>>, vector<1x128xf32>
    %54 = vector.broadcast %53 : vector<1x128xf32> to vector<32x128xf32>
    %55 = vector.broadcast %1 : vector<32x1xf32> to vector<32x128xf32>
    %56 = arith.mulf %54, %55 : vector<32x128xf32>
    %57 = vector.extract_strided_slice %2 {offsets = [0, 2], sizes = [32, 1], strides = [1, 1]} : vector<32x7xf32> to vector<32x1xf32>
    %58 = vector.broadcast %57 : vector<32x1xf32> to vector<32x128xf32>
    %59 = arith.addf %56, %58 : vector<32x128xf32>
    %60 = vector.broadcast %0 : vector<32x1xf32> to vector<32x128xf32>
    %61 = vector.broadcast %51 : vector<1x128xf32> to vector<32x128xf32>
    %62 = arith.mulf %60, %61 : vector<32x128xf32>
    %63 = arith.addf %59, %62 : vector<32x128xf32>
    %64 = math.tanh %63 : vector<32x128xf32>
    %65 = vector.broadcast %3 : vector<32x1xf32> to vector<32x128xf32>
    %66 = arith.mulf %65, %64 : vector<32x128xf32>
    %cst_24 = arith.constant dense<0.000000e+00> : vector<128xf32>
    %67 = vector.multi_reduction <add>, %66, %cst_24 [0] : vector<32x128xf32> to vector<128xf32>
    %68 = vector.shape_cast %67 : vector<128xf32> to vector<1x128xf32>
    %69 = vector.broadcast %4 : vector<1x1xf32> to vector<1x128xf32>
    %70 = arith.addf %68, %69 : vector<1x128xf32>
    %c2_25 = arith.constant 2 : index
    %71 = memref.load %arg1[%c2_25] : memref<7xf32, #tpu.memory_space<smem>>
    %72 = vector.broadcast %71 : f32 to vector<1x128xf32>
    %73 = arith.mulf %72, %70 : vector<1x128xf32>
    %74 = arith.addf %51, %73 : vector<1x128xf32>
    %c3 = arith.constant 3 : index
    %c0_26 = arith.constant 0 : index
    %75 = vector.load %arg9[%c3, %c0_26] : memref<8x128xf32, #tpu.memory_space<vmem>>, vector<1x128xf32>
    tpu.vector_store %arg9[%c3, %c0_26], %74 {strides = array<i32>} : memref<8x128xf32, #tpu.memory_space<vmem>>, vector<1x128xf32>,
    %c3_27 = arith.constant 3 : index
    %c0_28 = arith.constant 0 : index
    %76 = vector.load %arg3[%c3_27, %c0_28] : memref<7x128xf32, #tpu.memory_space<vmem>>, vector<1x128xf32>
    %77 = vector.broadcast %76 : vector<1x128xf32> to vector<32x128xf32>
    %78 = vector.broadcast %1 : vector<32x1xf32> to vector<32x128xf32>
    %79 = arith.mulf %77, %78 : vector<32x128xf32>
    %80 = vector.extract_strided_slice %2 {offsets = [0, 3], sizes = [32, 1], strides = [1, 1]} : vector<32x7xf32> to vector<32x1xf32>
    %81 = vector.broadcast %80 : vector<32x1xf32> to vector<32x128xf32>
    %82 = arith.addf %79, %81 : vector<32x128xf32>
    %83 = vector.broadcast %0 : vector<32x1xf32> to vector<32x128xf32>
    %84 = vector.broadcast %74 : vector<1x128xf32> to vector<32x128xf32>
    %85 = arith.mulf %83, %84 : vector<32x128xf32>
    %86 = arith.addf %82, %85 : vector<32x128xf32>
    %87 = math.tanh %86 : vector<32x128xf32>
    %88 = vector.broadcast %3 : vector<32x1xf32> to vector<32x128xf32>
    %89 = arith.mulf %88, %87 : vector<32x128xf32>
    %cst_29 = arith.constant dense<0.000000e+00> : vector<128xf32>
    %90 = vector.multi_reduction <add>, %89, %cst_29 [0] : vector<32x128xf32> to vector<128xf32>
    %91 = vector.shape_cast %90 : vector<128xf32> to vector<1x128xf32>
    %92 = vector.broadcast %4 : vector<1x1xf32> to vector<1x128xf32>
    %93 = arith.addf %91, %92 : vector<1x128xf32>
    %c3_30 = arith.constant 3 : index
    %94 = memref.load %arg1[%c3_30] : memref<7xf32, #tpu.memory_space<smem>>
    %95 = vector.broadcast %94 : f32 to vector<1x128xf32>
    %96 = arith.mulf %95, %93 : vector<1x128xf32>
    %97 = arith.addf %74, %96 : vector<1x128xf32>
    %c4 = arith.constant 4 : index
    %c0_31 = arith.constant 0 : index
    %98 = vector.load %arg9[%c4, %c0_31] : memref<8x128xf32, #tpu.memory_space<vmem>>, vector<1x128xf32>
    tpu.vector_store %arg9[%c4, %c0_31], %97 {strides = array<i32>} : memref<8x128xf32, #tpu.memory_space<vmem>>, vector<1x128xf32>,
    %c4_32 = arith.constant 4 : index
    %c0_33 = arith.constant 0 : index
    %99 = vector.load %arg3[%c4_32, %c0_33] : memref<7x128xf32, #tpu.memory_space<vmem>>, vector<1x128xf32>
    %100 = vector.broadcast %99 : vector<1x128xf32> to vector<32x128xf32>
    %101 = vector.broadcast %1 : vector<32x1xf32> to vector<32x128xf32>
    %102 = arith.mulf %100, %101 : vector<32x128xf32>
    %103 = vector.extract_strided_slice %2 {offsets = [0, 4], sizes = [32, 1], strides = [1, 1]} : vector<32x7xf32> to vector<32x1xf32>
    %104 = vector.broadcast %103 : vector<32x1xf32> to vector<32x128xf32>
    %105 = arith.addf %102, %104 : vector<32x128xf32>
    %106 = vector.broadcast %0 : vector<32x1xf32> to vector<32x128xf32>
    %107 = vector.broadcast %97 : vector<1x128xf32> to vector<32x128xf32>
    %108 = arith.mulf %106, %107 : vector<32x128xf32>
    %109 = arith.addf %105, %108 : vector<32x128xf32>
    %110 = math.tanh %109 : vector<32x128xf32>
    %111 = vector.broadcast %3 : vector<32x1xf32> to vector<32x128xf32>
    %112 = arith.mulf %111, %110 : vector<32x128xf32>
    %cst_34 = arith.constant dense<0.000000e+00> : vector<128xf32>
    %113 = vector.multi_reduction <add>, %112, %cst_34 [0] : vector<32x128xf32> to vector<128xf32>
    %114 = vector.shape_cast %113 : vector<128xf32> to vector<1x128xf32>
    %115 = vector.broadcast %4 : vector<1x1xf32> to vector<1x128xf32>
    %116 = arith.addf %114, %115 : vector<1x128xf32>
    %c4_35 = arith.constant 4 : index
    %117 = memref.load %arg1[%c4_35] : memref<7xf32, #tpu.memory_space<smem>>
    %118 = vector.broadcast %117 : f32 to vector<1x128xf32>
    %119 = arith.mulf %118, %116 : vector<1x128xf32>
    %120 = arith.addf %97, %119 : vector<1x128xf32>
    %c5 = arith.constant 5 : index
    %c0_36 = arith.constant 0 : index
    %121 = vector.load %arg9[%c5, %c0_36] : memref<8x128xf32, #tpu.memory_space<vmem>>, vector<1x128xf32>
    tpu.vector_store %arg9[%c5, %c0_36], %120 {strides = array<i32>} : memref<8x128xf32, #tpu.memory_space<vmem>>, vector<1x128xf32>,
    %c5_37 = arith.constant 5 : index
    %c0_38 = arith.constant 0 : index
    %122 = vector.load %arg3[%c5_37, %c0_38] : memref<7x128xf32, #tpu.memory_space<vmem>>, vector<1x128xf32>
    %123 = vector.broadcast %122 : vector<1x128xf32> to vector<32x128xf32>
    %124 = vector.broadcast %1 : vector<32x1xf32> to vector<32x128xf32>
    %125 = arith.mulf %123, %124 : vector<32x128xf32>
    %126 = vector.extract_strided_slice %2 {offsets = [0, 5], sizes = [32, 1], strides = [1, 1]} : vector<32x7xf32> to vector<32x1xf32>
    %127 = vector.broadcast %126 : vector<32x1xf32> to vector<32x128xf32>
    %128 = arith.addf %125, %127 : vector<32x128xf32>
    %129 = vector.broadcast %0 : vector<32x1xf32> to vector<32x128xf32>
    %130 = vector.broadcast %120 : vector<1x128xf32> to vector<32x128xf32>
    %131 = arith.mulf %129, %130 : vector<32x128xf32>
    %132 = arith.addf %128, %131 : vector<32x128xf32>
    %133 = math.tanh %132 : vector<32x128xf32>
    %134 = vector.broadcast %3 : vector<32x1xf32> to vector<32x128xf32>
    %135 = arith.mulf %134, %133 : vector<32x128xf32>
    %cst_39 = arith.constant dense<0.000000e+00> : vector<128xf32>
    %136 = vector.multi_reduction <add>, %135, %cst_39 [0] : vector<32x128xf32> to vector<128xf32>
    %137 = vector.shape_cast %136 : vector<128xf32> to vector<1x128xf32>
    %138 = vector.broadcast %4 : vector<1x1xf32> to vector<1x128xf32>
    %139 = arith.addf %137, %138 : vector<1x128xf32>
    %c5_40 = arith.constant 5 : index
    %140 = memref.load %arg1[%c5_40] : memref<7xf32, #tpu.memory_space<smem>>
    %141 = vector.broadcast %140 : f32 to vector<1x128xf32>
    %142 = arith.mulf %141, %139 : vector<1x128xf32>
    %143 = arith.addf %120, %142 : vector<1x128xf32>
    %c6 = arith.constant 6 : index
    %c0_41 = arith.constant 0 : index
    %144 = vector.load %arg9[%c6, %c0_41] : memref<8x128xf32, #tpu.memory_space<vmem>>, vector<1x128xf32>
    tpu.vector_store %arg9[%c6, %c0_41], %143 {strides = array<i32>} : memref<8x128xf32, #tpu.memory_space<vmem>>, vector<1x128xf32>,
    %c6_42 = arith.constant 6 : index
    %c0_43 = arith.constant 0 : index
    %145 = vector.load %arg3[%c6_42, %c0_43] : memref<7x128xf32, #tpu.memory_space<vmem>>, vector<1x128xf32>
    %146 = vector.broadcast %145 : vector<1x128xf32> to vector<32x128xf32>
    %147 = vector.broadcast %1 : vector<32x1xf32> to vector<32x128xf32>
    %148 = arith.mulf %146, %147 : vector<32x128xf32>
    %149 = vector.extract_strided_slice %2 {offsets = [0, 6], sizes = [32, 1], strides = [1, 1]} : vector<32x7xf32> to vector<32x1xf32>
    %150 = vector.broadcast %149 : vector<32x1xf32> to vector<32x128xf32>
    %151 = arith.addf %148, %150 : vector<32x128xf32>
    %152 = vector.broadcast %0 : vector<32x1xf32> to vector<32x128xf32>
    %153 = vector.broadcast %143 : vector<1x128xf32> to vector<32x128xf32>
    %154 = arith.mulf %152, %153 : vector<32x128xf32>
    %155 = arith.addf %151, %154 : vector<32x128xf32>
    %156 = math.tanh %155 : vector<32x128xf32>
    %157 = vector.broadcast %3 : vector<32x1xf32> to vector<32x128xf32>
    %158 = arith.mulf %157, %156 : vector<32x128xf32>
    %cst_44 = arith.constant dense<0.000000e+00> : vector<128xf32>
    %159 = vector.multi_reduction <add>, %158, %cst_44 [0] : vector<32x128xf32> to vector<128xf32>
    %160 = vector.shape_cast %159 : vector<128xf32> to vector<1x128xf32>
    %161 = vector.broadcast %4 : vector<1x1xf32> to vector<1x128xf32>
    %162 = arith.addf %160, %161 : vector<1x128xf32>
    %c6_45 = arith.constant 6 : index
    %163 = memref.load %arg1[%c6_45] : memref<7xf32, #tpu.memory_space<smem>>
    %164 = vector.broadcast %163 : f32 to vector<1x128xf32>
    %165 = arith.mulf %164, %162 : vector<1x128xf32>
    %166 = arith.addf %143, %165 : vector<1x128xf32>
    %c7 = arith.constant 7 : index
    %c0_46 = arith.constant 0 : index
    %167 = vector.load %arg9[%c7, %c0_46] : memref<8x128xf32, #tpu.memory_space<vmem>>, vector<1x128xf32>
    tpu.vector_store %arg9[%c7, %c0_46], %166 {strides = array<i32>} : memref<8x128xf32, #tpu.memory_space<vmem>>, vector<1x128xf32>,
    return
  }
  func.func @transform_0(%arg0: i32, %arg1: memref<7xf32, #tpu.memory_space<smem>>) -> (i32, i32) {
    %c0_i32 = arith.constant 0 : i32
    %c0_i32_0 = arith.constant 0 : i32
    return %c0_i32, %arg0 : i32, i32
  }
  func.func @transform_1(%arg0: i32, %arg1: memref<7xf32, #tpu.memory_space<smem>>) -> (i32, i32) {
    %c0_i32 = arith.constant 0 : i32
    %c0_i32_0 = arith.constant 0 : i32
    return %c0_i32, %arg0 : i32, i32
  }
  func.func @transform_2(%arg0: i32, %arg1: memref<7xf32, #tpu.memory_space<smem>>) -> (i32, i32) {
    %c0_i32 = arith.constant 0 : i32
    %c0_i32_0 = arith.constant 0 : i32
    %c0_i32_1 = arith.constant 0 : i32
    return %c0_i32, %c0_i32_0 : i32, i32
  }
  func.func @transform_3(%arg0: i32, %arg1: memref<7xf32, #tpu.memory_space<smem>>) -> (i32, i32) {
    %c0_i32 = arith.constant 0 : i32
    %c0_i32_0 = arith.constant 0 : i32
    %c0_i32_1 = arith.constant 0 : i32
    return %c0_i32, %c0_i32_0 : i32, i32
  }
  func.func @transform_4(%arg0: i32, %arg1: memref<7xf32, #tpu.memory_space<smem>>) -> (i32, i32) {
    %c0_i32 = arith.constant 0 : i32
    %c0_i32_0 = arith.constant 0 : i32
    %c0_i32_1 = arith.constant 0 : i32
    return %c0_i32, %c0_i32_0 : i32, i32
  }
  func.func @transform_5(%arg0: i32, %arg1: memref<7xf32, #tpu.memory_space<smem>>) -> (i32, i32) {
    %c0_i32 = arith.constant 0 : i32
    %c0_i32_0 = arith.constant 0 : i32
    %c0_i32_1 = arith.constant 0 : i32
    return %c0_i32, %c0_i32_0 : i32, i32
  }
  func.func @transform_6(%arg0: i32, %arg1: memref<7xf32, #tpu.memory_space<smem>>) -> (i32, i32) {
    %c0_i32 = arith.constant 0 : i32
    %c0_i32_0 = arith.constant 0 : i32
    %c0_i32_1 = arith.constant 0 : i32
    return %c0_i32, %c0_i32_0 : i32, i32
  }
  func.func @transform_7(%arg0: i32, %arg1: memref<7xf32, #tpu.memory_space<smem>>) -> (i32, i32) {
    %c0_i32 = arith.constant 0 : i32
    %c0_i32_0 = arith.constant 0 : i32
    return %c0_i32, %arg0 : i32, i32
  }
}

</mosaic_0001>

<llo_original>
// kernel: tpu_custom_call.1
$region0: #{tpu_custom_call.1}
  #allocation0 [shape = 'u32[]', space=smem, size = 0x4, offset = 0x4, fixed_abs, tag = 'smem constant byte address 0x4 - core index']
  #allocation1 [shape = 'u32[144,128]{1,0:T(1,128)}', space=vmem, size = 0x12000, scoped, tag = 'internal scratch']
  #allocation2 [shape = 's32[1]{0}', space=sflag, size = 0x4, scoped, tag = 'scoped memory for tpu_custom_call.1']
  #allocation3 [shape = 'u8[512]{0}', space=smem, size = 0x200, scoped, tag = 'prefetched SMEM operand 0']
  #allocation4 [shape = 'f32[1,1]{1,0:T(1,128)S(1)}', space=vmem, size = 0x200, scoped, tag = 'scoped memory for tpu_custom_call.1']
  %s0 = inlined_call_operand.vmem [shape: f32[7], index: 0, kind: input, shape index: {}]
  %s1 = inlined_call_operand.vmem [shape: f32[1,128], index: 1, kind: input, shape index: {}]
  %s2 = inlined_call_operand.vmem [shape: f32[7,128], index: 2, kind: input, shape index: {}]
  %s3 = inlined_call_operand.vmem [shape: f32[32,1], index: 3, kind: input, shape index: {}]
  %s4 = inlined_call_operand.vmem [shape: f32[32,1], index: 4, kind: input, shape index: {}]
  %s5 = inlined_call_operand.vmem [shape: f32[32,7], index: 5, kind: input, shape index: {}]
  %s6 = inlined_call_operand.vmem [shape: f32[32,1], index: 6, kind: input, shape index: {}]
  %s7 = inlined_call_operand.<no memory space> [shape: f32[1,1], index: 7, kind: input, shape index: {}]
  %s8 = inlined_call_operand.hbm [shape: f32[8,128], index: 8, kind: output, shape index: {}]
  %s9 = sld [smem:[#allocation0]]
  $region38: #{tpu_custom_call.1} parent=0
    _
  %s11 = ssub.s32 1, %s9
  %s12 = scalar_select 0, %s11, %s9
  %s13 = sshll.u32 %s0, 4
  %s14 = int_to_ptr.vmem [resolvable:$true] %s13
  %16 = dma.vmem_to_smem %s14, 16, [#allocation3], [#allocation2]
  %v17 = vstv %s7
  %18 = vst [vmem:[#allocation4] sm:$0x1] %v17
  %19 = dma.done [#allocation2], 16
  %20 = sfence
  $region1: #{tpu_custom_call.1} parent=0
    #allocation5 [shape = 'u8[4096]{0}', space=vmem, size = 0x1000, scoped, tag = 'output window, operand 0, single buffered']
    #allocation6 [shape = 's32[1]{0}', space=sflag, size = 0x4, scoped, tag = 'scoped memory for tpu_custom_call.1']
    %21 = vsyncpa [#allocation6], 0
    // Predicated region
    $region2: #{tpu_custom_call.1} parent=1 // pred_check
      _
    $region3: #{tpu_custom_call.1} parent=1 // pred_check_branch
      %23 = sbr.rel (0) target = $region5
    $region4: #{tpu_custom_call.1} parent=1 // pred_region
      _
    $region5: #{tpu_custom_call.1} parent=1 // pred_fallthru
      _
    // Predicated region
    $region6: #{tpu_custom_call.1} parent=1 // pred_check
      _
    $region7: #{tpu_custom_call.1} parent=1 // pred_check_branch
      %25 = sbr.rel (0) target = $region9
    $region8: #{tpu_custom_call.1} parent=1 // pred_region
      _
    $region9: #{tpu_custom_call.1} parent=1 // pred_fallthru
      _
    // Predicated region
    $region10: #{tpu_custom_call.1} parent=1 // pred_check
      _
    $region11: #{tpu_custom_call.1} parent=1 // pred_check_branch
      %27 = sbr.rel (0) target = $region13
    $region12: #{tpu_custom_call.1} parent=1 // pred_region
      _
    $region13: #{tpu_custom_call.1} parent=1 // pred_fallthru
      _
    // Predicated region
    $region14: #{tpu_custom_call.1} parent=1 // pred_check
      _
    $region15: #{tpu_custom_call.1} parent=1 // pred_check_branch
      %29 = sbr.rel (0) target = $region17
    $region16: #{tpu_custom_call.1} parent=1 // pred_region
      _
    $region17: #{tpu_custom_call.1} parent=1 // pred_fallthru
      _
    // Predicated region
    $region18: #{tpu_custom_call.1} parent=1 // pred_check
      _
    $region19: #{tpu_custom_call.1} parent=1 // pred_check_branch
      %31 = sbr.rel (0) target = $region21
    $region20: #{tpu_custom_call.1} parent=1 // pred_region
      _
    $region21: #{tpu_custom_call.1} parent=1 // pred_fallthru
      _
    // Predicated region
    $region22: #{tpu_custom_call.1} parent=1 // pred_check
      _
    $region23: #{tpu_custom_call.1} parent=1 // pred_check_branch
      %33 = sbr.rel (0) target = $region25
    $region24: #{tpu_custom_call.1} parent=1 // pred_region
      _
    $region25: #{tpu_custom_call.1} parent=1 // pred_fallthru
      _
    // Predicated region
    $region26: #{tpu_custom_call.1} parent=1 // pred_check
      _
    $region27: #{tpu_custom_call.1} parent=1 // pred_check_branch
      %35 = sbr.rel (0) target = $region29
    $region28: #{tpu_custom_call.1} parent=1 // pred_region
      _
    $region29: #{tpu_custom_call.1} parent=1 // pred_fallthru
      _
    %v36 = vld [vmem:[%s3] sm:$0xff]
    %v37 = vld [vmem:[%s3 + $0x8] sm:$0xff]
    %v38 = vld [vmem:[%s3 + $0x10] sm:$0xff]
    %v39 = vld [vmem:[%s3 + $0x18] sm:$0xff]
    %v40 = vld [vmem:[%s4] sm:$0xff]
    %v41 = vld [vmem:[%s4 + $0x8] sm:$0xff]
    %v42 = vld [vmem:[%s4 + $0x10] sm:$0xff]
    %v43 = vld [vmem:[%s4 + $0x18] sm:$0xff]
    %v44 = vld [vmem:[%s5] sm:$0xff]
    %v45 = vld [vmem:[%s5 + $0x8] sm:$0xff]
    %v46 = vld [vmem:[%s5 + $0x10] sm:$0xff]
    %v47 = vld [vmem:[%s5 + $0x18] sm:$0xff]
    %v48 = vld [vmem:[%s6] sm:$0xff]
    %v49 = vld [vmem:[%s6 + $0x8] sm:$0xff]
    %v50 = vld [vmem:[%s6 + $0x10] sm:$0xff]
    %v51 = vld [vmem:[%s6 + $0x18] sm:$0xff]
    %v52 = vld [vmem:[#allocation4] sm:$0x1]
    %v53 = vld [vmem:[%s1] sm:$0x1]
    %54 = vst [vmem:[#allocation5] sm:$0x1] %v53
    %v55 = vld [vmem:[%s2] sm:$0x1]
    %v56 = vlaneseq
    %v57 = vshrl.u32 %v56, 7
    %v58 = vsub.s32 0, %v57
    %v59 = vrot.slane %v55, %v58
    %61 = vset.pattern.permute.xlu0 0
    %62 = vperm.xlu0 %61, %v40
    %v63 = vpop.permute.xlu0 %62
    %66 = vset.pattern.permute.xlu0 0
    %67 = vperm.xlu0 %66, %v41
    %v68 = vpop.permute.xlu0 %67
    %71 = vset.pattern.permute.xlu0 0
    %72 = vperm.xlu0 %71, %v42
    %v73 = vpop.permute.xlu0 %72
    %76 = vset.pattern.permute.xlu0 0
    %77 = vperm.xlu0 %76, %v43
    %v78 = vpop.permute.xlu0 %77
    %v80 = vmul.f32 %v59, %v63
    %v81 = vmul.f32 %v59, %v68
    %v82 = vmul.f32 %v59, %v73
    %v83 = vmul.f32 %v59, %v78
    %85 = vset.pattern.permute.xlu0 0
    %86 = vperm.xlu0 %85, %v44
    %v87 = vpop.permute.xlu0 %86
    %90 = vset.pattern.permute.xlu0 0
    %91 = vperm.xlu0 %90, %v45
    %v92 = vpop.permute.xlu0 %91
    %95 = vset.pattern.permute.xlu0 0
    %96 = vperm.xlu0 %95, %v46
    %v97 = vpop.permute.xlu0 %96
    %100 = vset.pattern.permute.xlu0 0
    %101 = vperm.xlu0 %100, %v47
    %v102 = vpop.permute.xlu0 %101
    %v104 = vadd.f32 %v80, %v87
    %v105 = vadd.f32 %v81, %v92
    %v106 = vadd.f32 %v82, %v97
    %v107 = vadd.f32 %v83, %v102
    %109 = vset.pattern.permute.xlu0 0
    %110 = vperm.xlu0 %109, %v36
    %v111 = vpop.permute.xlu0 %110
    %114 = vset.pattern.permute.xlu0 0
    %115 = vperm.xlu0 %114, %v37
    %v116 = vpop.permute.xlu0 %115
    %119 = vset.pattern.permute.xlu0 0
    %120 = vperm.xlu0 %119, %v38
    %v121 = vpop.permute.xlu0 %120
    %124 = vset.pattern.permute.xlu0 0
    %125 = vperm.xlu0 %124, %v39
    %v126 = vpop.permute.xlu0 %125
    %v129 = vlaneseq
    %v130 = vshrl.u32 %v129, 7
    %v131 = vsub.s32 0, %v130
    %v132 = vrot.slane %v53, %v131
    %v134 = vmul.f32 %v111, %v132
    %v135 = vmul.f32 %v116, %v132
    %v136 = vmul.f32 %v121, %v132
    %v137 = vmul.f32 %v126, %v132
    %v138 = vadd.f32 %v104, %v134
    %v139 = vadd.f32 %v105, %v135
    %v140 = vadd.f32 %v106, %v136
    %v141 = vadd.f32 %v107, %v137
    %v142 = vtanh.pop %v138
    %v143 = vtanh.pop %v139
    %v144 = vtanh.pop %v140
    %v145 = vtanh.pop %v141
    %147 = vset.pattern.permute.xlu0 0
    %148 = vperm.xlu0 %147, %v48
    %v149 = vpop.permute.xlu0 %148
    %152 = vset.pattern.permute.xlu0 0
    %153 = vperm.xlu0 %152, %v49
    %v154 = vpop.permute.xlu0 %153
    %157 = vset.pattern.permute.xlu0 0
    %158 = vperm.xlu0 %157, %v50
    %v159 = vpop.permute.xlu0 %158
    %162 = vset.pattern.permute.xlu0 0
    %163 = vperm.xlu0 %162, %v51
    %v164 = vpop.permute.xlu0 %163
    %v166 = vmul.f32 %v149, %v142
    %v167 = vmul.f32 %v154, %v143
    %v168 = vmul.f32 %v159, %v144
    %v169 = vmul.f32 %v164, %v145
    %v170 = vadd.f32 %v166, %v167
    %v171 = vadd.f32 %v170, %v168
    %v172 = vadd.f32 %v171, %v169
    %v173 = vrot.slane %v172, 4
    %v174 = vadd.f32 %v172, %v173
    %v175 = vrot.slane %v174, 2
    %v176 = vadd.f32 %v174, %v175
    %v177 = vrot.slane %v176, 1
    %v178 = vadd.f32 %v176, %v177
    %180 = vset.pattern.permute.xlu0 0
    %181 = vperm.xlu0 %180, %v52
    %v182 = vpop.permute.xlu0 %181
    %v184 = vlaneseq
    %v185 = vshrl.u32 %v184, 7
    %v186 = vsub.s32 0, %v185
    %v187 = vrot.slane %v182, %v186
    %v188 = vadd.f32 %v178, %v187
    %s189 = sld [smem:[#allocation3]]
    %v190 = vstv %s189
    %v191 = vmul.f32 %v190, %v188
    %v192 = vadd.f32 %v53, %v191
    %193 = vst [vmem:[#allocation5 + $0x1] sm:$0x1] %v192
    %v194 = vld [vmem:[%s2 + $0x1] sm:$0x1]
    %v195 = vlaneseq
    %v196 = vshrl.u32 %v195, 7
    %v197 = vsub.s32 0, %v196
    %v198 = vrot.slane %v194, %v197
    %v199 = vmul.f32 %v198, %v63
    %v200 = vmul.f32 %v198, %v68
    %v201 = vmul.f32 %v198, %v73
    %v202 = vmul.f32 %v198, %v78
    %203 = vset.pattern.permute.xlu0 1
    %204 = vperm.xlu0 %203, %v44
    %v205 = vpop.permute.xlu0 %204
    %207 = vset.pattern.permute.xlu0 1
    %208 = vperm.xlu0 %207, %v45
    %v209 = vpop.permute.xlu0 %208
    %211 = vset.pattern.permute.xlu0 1
    %212 = vperm.xlu0 %211, %v46
    %v213 = vpop.permute.xlu0 %212
    %215 = vset.pattern.permute.xlu0 1
    %216 = vperm.xlu0 %215, %v47
    %v217 = vpop.permute.xlu0 %216
    %v219 = vadd.f32 %v199, %v205
    %v220 = vadd.f32 %v200, %v209
    %v221 = vadd.f32 %v201, %v213
    %v222 = vadd.f32 %v202, %v217
    %v224 = vlaneseq
    %v225 = vshrl.u32 %v224, 7
    %v226 = vsub.s32 0, %v225
    %v227 = vrot.slane %v192, %v226
    %v229 = vmul.f32 %v111, %v227
    %v230 = vmul.f32 %v116, %v227
    %v231 = vmul.f32 %v121, %v227
    %v232 = vmul.f32 %v126, %v227
    %v233 = vadd.f32 %v219, %v229
    %v234 = vadd.f32 %v220, %v230
    %v235 = vadd.f32 %v221, %v231
    %v236 = vadd.f32 %v222, %v232
    %v237 = vtanh.pop %v233
    %v238 = vtanh.pop %v234
    %v239 = vtanh.pop %v235
    %v240 = vtanh.pop %v236
    %v241 = vmul.f32 %v149, %v237
    %v242 = vmul.f32 %v154, %v238
    %v243 = vmul.f32 %v159, %v239
    %v244 = vmul.f32 %v164, %v240
    %v245 = vadd.f32 %v241, %v242
    %v246 = vadd.f32 %v245, %v243
    %v247 = vadd.f32 %v246, %v244
    %v248 = vrot.slane %v247, 4
    %v249 = vadd.f32 %v247, %v248
    %v250 = vrot.slane %v249, 2
    %v251 = vadd.f32 %v249, %v250
    %v252 = vrot.slane %v251, 1
    %v253 = vadd.f32 %v251, %v252
    %v254 = vadd.f32 %v253, %v187
    %s255 = sld [smem:[#allocation3 + $0x1]]
    %v256 = vstv %s255
    %v257 = vmul.f32 %v256, %v254
    %v258 = vadd.f32 %v192, %v257
    %259 = vst [vmem:[#allocation5 + $0x2] sm:$0x1] %v258
    %v260 = vld [vmem:[%s2 + $0x2] sm:$0x1]
    %v261 = vlaneseq
    %v262 = vshrl.u32 %v261, 7
    %v263 = vsub.s32 0, %v262
    %v264 = vrot.slane %v260, %v263
    %v265 = vmul.f32 %v264, %v63
    %v266 = vmul.f32 %v264, %v68
    %v267 = vmul.f32 %v264, %v73
    %v268 = vmul.f32 %v264, %v78
    %269 = vset.pattern.permute.xlu0 2
    %270 = vperm.xlu0 %269, %v44
    %v271 = vpop.permute.xlu0 %270
    %273 = vset.pattern.permute.xlu0 2
    %274 = vperm.xlu0 %273, %v45
    %v275 = vpop.permute.xlu0 %274
    %277 = vset.pattern.permute.xlu0 2
    %278 = vperm.xlu0 %277, %v46
    %v279 = vpop.permute.xlu0 %278
    %281 = vset.pattern.permute.xlu0 2
    %282 = vperm.xlu0 %281, %v47
    %v283 = vpop.permute.xlu0 %282
    %v285 = vadd.f32 %v265, %v271
    %v286 = vadd.f32 %v266, %v275
    %v287 = vadd.f32 %v267, %v279
    %v288 = vadd.f32 %v268, %v283
    %v290 = vlaneseq
    %v291 = vshrl.u32 %v290, 7
    %v292 = vsub.s32 0, %v291
    %v293 = vrot.slane %v258, %v292
    %v295 = vmul.f32 %v111, %v293
    %v296 = vmul.f32 %v116, %v293
    %v297 = vmul.f32 %v121, %v293
    %v298 = vmul.f32 %v126, %v293
    %v299 = vadd.f32 %v285, %v295
    %v300 = vadd.f32 %v286, %v296
    %v301 = vadd.f32 %v287, %v297
    %v302 = vadd.f32 %v288, %v298
    %v303 = vtanh.pop %v299
    %v304 = vtanh.pop %v300
    %v305 = vtanh.pop %v301
    %v306 = vtanh.pop %v302
    %v307 = vmul.f32 %v149, %v303
    %v308 = vmul.f32 %v154, %v304
    %v309 = vmul.f32 %v159, %v305
    %v310 = vmul.f32 %v164, %v306
    %v311 = vadd.f32 %v307, %v308
    %v312 = vadd.f32 %v311, %v309
    %v313 = vadd.f32 %v312, %v310
    %v314 = vrot.slane %v313, 4
    %v315 = vadd.f32 %v313, %v314
    %v316 = vrot.slane %v315, 2
    %v317 = vadd.f32 %v315, %v316
    %v318 = vrot.slane %v317, 1
    %v319 = vadd.f32 %v317, %v318
    %v320 = vadd.f32 %v319, %v187
    %s321 = sld [smem:[#allocation3 + $0x2]]
    %v322 = vstv %s321
    %v323 = vmul.f32 %v322, %v320
    %v324 = vadd.f32 %v258, %v323
    %325 = vst [vmem:[#allocation5 + $0x3] sm:$0x1] %v324
    %v326 = vld [vmem:[%s2 + $0x3] sm:$0x1]
    %v327 = vlaneseq
    %v328 = vshrl.u32 %v327, 7
    %v329 = vsub.s32 0, %v328
    %v330 = vrot.slane %v326, %v329
    %v331 = vmul.f32 %v330, %v63
    %v332 = vmul.f32 %v330, %v68
    %v333 = vmul.f32 %v330, %v73
    %v334 = vmul.f32 %v330, %v78
    %335 = vset.pattern.permute.xlu0 3
    %336 = vperm.xlu0 %335, %v44
    %v337 = vpop.permute.xlu0 %336
    %339 = vset.pattern.permute.xlu0 3
    %340 = vperm.xlu0 %339, %v45
    %v341 = vpop.permute.xlu0 %340
    %343 = vset.pattern.permute.xlu0 3
    %344 = vperm.xlu0 %343, %v46
    %v345 = vpop.permute.xlu0 %344
    %347 = vset.pattern.permute.xlu0 3
    %348 = vperm.xlu0 %347, %v47
    %v349 = vpop.permute.xlu0 %348
    %v351 = vadd.f32 %v331, %v337
    %v352 = vadd.f32 %v332, %v341
    %v353 = vadd.f32 %v333, %v345
    %v354 = vadd.f32 %v334, %v349
    %v356 = vlaneseq
    %v357 = vshrl.u32 %v356, 7
    %v358 = vsub.s32 0, %v357
    %v359 = vrot.slane %v324, %v358
    %v361 = vmul.f32 %v111, %v359
    %v362 = vmul.f32 %v116, %v359
    %v363 = vmul.f32 %v121, %v359
    %v364 = vmul.f32 %v126, %v359
    %v365 = vadd.f32 %v351, %v361
    %v366 = vadd.f32 %v352, %v362
    %v367 = vadd.f32 %v353, %v363
    %v368 = vadd.f32 %v354, %v364
    %v369 = vtanh.pop %v365
    %v370 = vtanh.pop %v366
    %v371 = vtanh.pop %v367
    %v372 = vtanh.pop %v368
    %v373 = vmul.f32 %v149, %v369
    %v374 = vmul.f32 %v154, %v370
    %v375 = vmul.f32 %v159, %v371
    %v376 = vmul.f32 %v164, %v372
    %v377 = vadd.f32 %v373, %v374
    %v378 = vadd.f32 %v377, %v375
    %v379 = vadd.f32 %v378, %v376
    %v380 = vrot.slane %v379, 4
    %v381 = vadd.f32 %v379, %v380
    %v382 = vrot.slane %v381, 2
    %v383 = vadd.f32 %v381, %v382
    %v384 = vrot.slane %v383, 1
    %v385 = vadd.f32 %v383, %v384
    %v386 = vadd.f32 %v385, %v187
    %s387 = sld [smem:[#allocation3 + $0x3]]
    %v388 = vstv %s387
    %v389 = vmul.f32 %v388, %v386
    %v390 = vadd.f32 %v324, %v389
    %391 = vst [vmem:[#allocation5 + $0x4] sm:$0x1] %v390
    %v392 = vld [vmem:[%s2 + $0x4] sm:$0x1]
    %v393 = vlaneseq
    %v394 = vshrl.u32 %v393, 7
    %v395 = vsub.s32 0, %v394
    %v396 = vrot.slane %v392, %v395
    %v397 = vmul.f32 %v396, %v63
    %v398 = vmul.f32 %v396, %v68
    %v399 = vmul.f32 %v396, %v73
    %v400 = vmul.f32 %v396, %v78
    %401 = vset.pattern.permute.xlu0 4
    %402 = vperm.xlu0 %401, %v44
    %v403 = vpop.permute.xlu0 %402
    %405 = vset.pattern.permute.xlu0 4
    %406 = vperm.xlu0 %405, %v45
    %v407 = vpop.permute.xlu0 %406
    %409 = vset.pattern.permute.xlu0 4
    %410 = vperm.xlu0 %409, %v46
    %v411 = vpop.permute.xlu0 %410
    %413 = vset.pattern.permute.xlu0 4
    %414 = vperm.xlu0 %413, %v47
    %v415 = vpop.permute.xlu0 %414
    %v417 = vadd.f32 %v397, %v403
    %v418 = vadd.f32 %v398, %v407
    %v419 = vadd.f32 %v399, %v411
    %v420 = vadd.f32 %v400, %v415
    %v422 = vlaneseq
    %v423 = vshrl.u32 %v422, 7
    %v424 = vsub.s32 0, %v423
    %v425 = vrot.slane %v390, %v424
    %v427 = vmul.f32 %v111, %v425
    %v428 = vmul.f32 %v116, %v425
    %v429 = vmul.f32 %v121, %v425
    %v430 = vmul.f32 %v126, %v425
    %v431 = vadd.f32 %v417, %v427
    %v432 = vadd.f32 %v418, %v428
    %v433 = vadd.f32 %v419, %v429
    %v434 = vadd.f32 %v420, %v430
    %v435 = vtanh.pop %v431
    %v436 = vtanh.pop %v432
    %v437 = vtanh.pop %v433
    %v438 = vtanh.pop %v434
    %v439 = vmul.f32 %v149, %v435
    %v440 = vmul.f32 %v154, %v436
    %v441 = vmul.f32 %v159, %v437
    %v442 = vmul.f32 %v164, %v438
    %v443 = vadd.f32 %v439, %v440
    %v444 = vadd.f32 %v443, %v441
    %v445 = vadd.f32 %v444, %v442
    %v446 = vrot.slane %v445, 4
    %v447 = vadd.f32 %v445, %v446
    %v448 = vrot.slane %v447, 2
    %v449 = vadd.f32 %v447, %v448
    %v450 = vrot.slane %v449, 1
    %v451 = vadd.f32 %v449, %v450
    %v452 = vadd.f32 %v451, %v187
    %s453 = sld [smem:[#allocation3 + $0x4]]
    %v454 = vstv %s453
    %v455 = vmul.f32 %v454, %v452
    %v456 = vadd.f32 %v390, %v455
    %457 = vst [vmem:[#allocation5 + $0x5] sm:$0x1] %v456
    %v458 = vld [vmem:[%s2 + $0x5] sm:$0x1]
    %v459 = vlaneseq
    %v460 = vshrl.u32 %v459, 7
    %v461 = vsub.s32 0, %v460
    %v462 = vrot.slane %v458, %v461
    %v463 = vmul.f32 %v462, %v63
    %v464 = vmul.f32 %v462, %v68
    %v465 = vmul.f32 %v462, %v73
    %v466 = vmul.f32 %v462, %v78
    %467 = vset.pattern.permute.xlu0 5
    %468 = vperm.xlu0 %467, %v44
    %v469 = vpop.permute.xlu0 %468
    %471 = vset.pattern.permute.xlu0 5
    %472 = vperm.xlu0 %471, %v45
    %v473 = vpop.permute.xlu0 %472
    %475 = vset.pattern.permute.xlu0 5
    %476 = vperm.xlu0 %475, %v46
    %v477 = vpop.permute.xlu0 %476
    %479 = vset.pattern.permute.xlu0 5
    %480 = vperm.xlu0 %479, %v47
    %v481 = vpop.permute.xlu0 %480
    %v483 = vadd.f32 %v463, %v469
    %v484 = vadd.f32 %v464, %v473
    %v485 = vadd.f32 %v465, %v477
    %v486 = vadd.f32 %v466, %v481
    %v488 = vlaneseq
    %v489 = vshrl.u32 %v488, 7
    %v490 = vsub.s32 0, %v489
    %v491 = vrot.slane %v456, %v490
    %v493 = vmul.f32 %v111, %v491
    %v494 = vmul.f32 %v116, %v491
    %v495 = vmul.f32 %v121, %v491
    %v496 = vmul.f32 %v126, %v491
    %v497 = vadd.f32 %v483, %v493
    %v498 = vadd.f32 %v484, %v494
    %v499 = vadd.f32 %v485, %v495
    %v500 = vadd.f32 %v486, %v496
    %v501 = vtanh.pop %v497
    %v502 = vtanh.pop %v498
    %v503 = vtanh.pop %v499
    %v504 = vtanh.pop %v500
    %v505 = vmul.f32 %v149, %v501
    %v506 = vmul.f32 %v154, %v502
    %v507 = vmul.f32 %v159, %v503
    %v508 = vmul.f32 %v164, %v504
    %v509 = vadd.f32 %v505, %v506
    %v510 = vadd.f32 %v509, %v507
    %v511 = vadd.f32 %v510, %v508
    %v512 = vrot.slane %v511, 4
    %v513 = vadd.f32 %v511, %v512
    %v514 = vrot.slane %v513, 2
    %v515 = vadd.f32 %v513, %v514
    %v516 = vrot.slane %v515, 1
    %v517 = vadd.f32 %v515, %v516
    %v518 = vadd.f32 %v517, %v187
    %s519 = sld [smem:[#allocation3 + $0x5]]
    %v520 = vstv %s519
    %v521 = vmul.f32 %v520, %v518
    %v522 = vadd.f32 %v456, %v521
    %523 = vst [vmem:[#allocation5 + $0x6] sm:$0x1] %v522
    %v524 = vld [vmem:[%s2 + $0x6] sm:$0x1]
    %v525 = vlaneseq
    %v526 = vshrl.u32 %v525, 7
    %v527 = vsub.s32 0, %v526
    %v528 = vrot.slane %v524, %v527
    %v529 = vmul.f32 %v528, %v63
    %v530 = vmul.f32 %v528, %v68
    %v531 = vmul.f32 %v528, %v73
    %v532 = vmul.f32 %v528, %v78
    %533 = vset.pattern.permute.xlu0 6
    %534 = vperm.xlu0 %533, %v44
    %v535 = vpop.permute.xlu0 %534
    %537 = vset.pattern.permute.xlu0 6
    %538 = vperm.xlu0 %537, %v45
    %v539 = vpop.permute.xlu0 %538
    %541 = vset.pattern.permute.xlu0 6
    %542 = vperm.xlu0 %541, %v46
    %v543 = vpop.permute.xlu0 %542
    %545 = vset.pattern.permute.xlu0 6
    %546 = vperm.xlu0 %545, %v47
    %v547 = vpop.permute.xlu0 %546
    %v549 = vadd.f32 %v529, %v535
    %v550 = vadd.f32 %v530, %v539
    %v551 = vadd.f32 %v531, %v543
    %v552 = vadd.f32 %v532, %v547
    %v554 = vlaneseq
    %v555 = vshrl.u32 %v554, 7
    %v556 = vsub.s32 0, %v555
    %v557 = vrot.slane %v522, %v556
    %v559 = vmul.f32 %v111, %v557
    %v560 = vmul.f32 %v116, %v557
    %v561 = vmul.f32 %v121, %v557
    %v562 = vmul.f32 %v126, %v557
    %v563 = vadd.f32 %v549, %v559
    %v564 = vadd.f32 %v550, %v560
    %v565 = vadd.f32 %v551, %v561
    %v566 = vadd.f32 %v552, %v562
    %v567 = vtanh.pop %v563
    %v568 = vtanh.pop %v564
    %v569 = vtanh.pop %v565
    %v570 = vtanh.pop %v566
    %v571 = vmul.f32 %v149, %v567
    %v572 = vmul.f32 %v154, %v568
    %v573 = vmul.f32 %v159, %v569
    %v574 = vmul.f32 %v164, %v570
    %v575 = vadd.f32 %v571, %v572
    %v576 = vadd.f32 %v575, %v573
    %v577 = vadd.f32 %v576, %v574
    %v578 = vrot.slane %v577, 4
    %v579 = vadd.f32 %v577, %v578
    %v580 = vrot.slane %v579, 2
    %v581 = vadd.f32 %v579, %v580
    %v582 = vrot.slane %v581, 1
    %v583 = vadd.f32 %v581, %v582
    %v584 = vadd.f32 %v583, %v187
    %s585 = sld [smem:[#allocation3 + $0x6]]
    %v586 = vstv %s585
    %v587 = vmul.f32 %v586, %v584
    %v588 = vadd.f32 %v522, %v587
    %589 = vst [vmem:[#allocation5 + $0x7] sm:$0x1] %v588
    // Predicated region
    $region30: #{tpu_custom_call.1} parent=1 // pred_check
      _
    $region31: #{tpu_custom_call.1} parent=1 // pred_check_branch
      %591 = sbr.rel (0) target = $region33
    $region32: #{tpu_custom_call.1} parent=1 // pred_region
      %s593 = ssub.s32 128, 128
      %594 = vsyncadd [#allocation6], %s593
      %s596 = sshll.u32 [#allocation5], 4
      %s597 = int_to_ptr.vmem [resolvable:$true] %s596
      %599 = dma.vmem_to_hbm [thread:$0]  %s597, 128, %s8, [#allocation6]
    $region33: #{tpu_custom_call.1} parent=1 // pred_fallthru
      _
    // Predicated region
    $region34: #{tpu_custom_call.1} parent=1 // pred_check
      _
    $region35: #{tpu_custom_call.1} parent=1 // pred_check_branch
      %601 = sbr.rel (0) target = $region37
    $region36: #{tpu_custom_call.1} parent=1 // pred_region
      %602 = dma.done [#allocation6], 128
    $region37: #{tpu_custom_call.1} parent=1 // pred_fallthru
      _
    %603 = vsyncpa [#allocation6], 1

</llo_original>
